<compile_context>
chip_gen: v5e
topology: v5e:2x2
jax: 0.10.0
libtpu: 0.0.40
codegen_flags: <defaults>
</compile_context>

<pallas_src>
import jax
import jax.numpy as jnp
from jax.experimental import pallas as pl
from jax.experimental.pallas import tpu as pltpu


def _chomp_copy_kernel(x_ref, o_ref):
    # Pure pass-through: identical (row_tile, lane_tile) blocks on input and
    # output; the BlockSpec already skipped the chomped tail.
    o_ref[...] = x_ref[...]


def _round_up(v: int, m: int) -> int:
    return ((v + m - 1) // m) * m


def chomp1d(x: jax.Array, chomp_size: int) -> jax.Array:
    """Equivalent of torch `x[:, :, :-chomp_size].contiguous()` for (N, C, L)."""
    assert x.ndim == 3, "expected (N, C, L) input"
    N, C, L = x.shape
    assert 1 <= chomp_size < L, "require 1 <= chomp_size < L"
    L_out = L - chomp_size

    # Collapse batch and channel into one row axis (free view — only the last
    # axis is sliced), so sublanes are filled even for small C.
    NR = N * C
    x2 = x.reshape(NR, L)

    itemsize = jnp.dtype(x.dtype).itemsize
    # Minimum sublane packing: 8 for 32-bit, 16 for bf16, 32 for int8.
    sublane_mult = max(8, 32 // max(itemsize, 1))
    row_tile = min(256, _round_up(NR, sublane_mult))
    lane_tile = min(1024, _round_up(L_out, 128))

    grid = (pl.cdiv(NR, row_tile), pl.cdiv(L_out, lane_tile))

    # Double-buffered in + out tiles, plus headroom; stays under every
    # generation's default scoped VMEM limit for these bounded tiles.
    tile_bytes = row_tile * lane_tile * itemsize
    vmem_limit = int(min(64 * 1024 * 1024, max(8 * 1024 * 1024, 6 * tile_bytes)))

    out2 = pl.pallas_call(
        _chomp_copy_kernel,
        out_shape=jax.ShapeDtypeStruct((NR, L_out), x.dtype),
        grid_spec=pltpu.PrefetchScalarGridSpec(
            num_scalar_prefetch=0,
            grid=grid,
            # Identical block shapes + index maps for input and output: the
            # input DMA never touches the chomped tail, and edge blocks are
            # handled by Pallas (OOB reads padded, OOB writes discarded).
            in_specs=[pl.BlockSpec((row_tile, lane_tile), lambda r, l: (r, l))],
            out_specs=pl.BlockSpec((row_tile, lane_tile), lambda r, l: (r, l)),
        ),
        compiler_params=pltpu.CompilerParams(
            dimension_semantics=("parallel", "parallel"),
            vmem_limit_bytes=vmem_limit,
        ),
    )(x2)

    return out2.reshape(N, C, L_out)


if __name__ == "__main__":
    key = jax.random.PRNGKey(0)
    N, C, L = 2, 4, 16
    chomp_size = 3  # Chomp1d(chomp_size=3)

    x = jax.random.normal(key, (N, C, L), dtype=jnp.float32)

    y = chomp1d(x, chomp_size)
    y = jax.block_until_ready(y)

    # Reference: plain-JAX slicing (same semantics as the torch module).
    y_ref = x[:, :, :-chomp_size]
    assert y.shape == (N, C, L - chomp_size), y.shape
    assert jnp.array_equal(y, y_ref), "mismatch vs reference slice"

    print("KERNEL_OK")
</pallas_src>

<mosaic_0001>
module attributes {stable_mosaic.version = 11 : i64} {
  func.func @_chomp_copy_kernel(%arg0: i32, %arg1: i32, %arg2: memref<8x128xf32, #tpu.memory_space<vmem>>, %arg3: memref<8x128xf32, #tpu.memory_space<vmem>>) attributes {dimension_semantics = [#tpu.dimension_semantics<parallel>, #tpu.dimension_semantics<parallel>], iteration_bounds = array<i64: 1, 1>, scalar_prefetch = 0 : i64, scratch_operands = 0 : i64, tpu.core_type = #tpu.core_type<tc>, window_params = [{transform_indices = @transform_0, window_bounds = array<i64: 8, 128>}, {transform_indices = @transform_1, window_bounds = array<i64: 8, 128>}]} {
    %c0 = arith.constant 0 : index
    %c0_0 = arith.constant 0 : index
    %0 = vector.load %arg2[%c0, %c0_0] : memref<8x128xf32, #tpu.memory_space<vmem>>, vector<8x128xf32>
    %c0_1 = arith.constant 0 : index
    %c0_2 = arith.constant 0 : index
    %1 = vector.load %arg3[%c0_1, %c0_2] : memref<8x128xf32, #tpu.memory_space<vmem>>, vector<8x128xf32>
    tpu.vector_store %arg3[%c0_1, %c0_2], %0 {strides = array<i32>} : memref<8x128xf32, #tpu.memory_space<vmem>>, vector<8x128xf32>,
    return
  }
  func.func @transform_0(%arg0: i32, %arg1: i32) -> (i32, i32) {
    %c0_i32 = arith.constant 0 : i32
    return %arg0, %arg1 : i32, i32
  }
  func.func @transform_1(%arg0: i32, %arg1: i32) -> (i32, i32) {
    %c0_i32 = arith.constant 0 : i32
    return %arg0, %arg1 : i32, i32
  }
}

</mosaic_0001>

<llo_original>
// kernel: tpu_custom_call.1
$region0: #{tpu_custom_call.1}
  #allocation0 [shape = 'u32[]', space=smem, size = 0x4, offset = 0x4, fixed_abs, tag = 'smem constant byte address 0x4 - core index']
  #allocation1 [shape = 'u32[72,128]{1,0:T(1,128)}', space=vmem, size = 0x9000, scoped, tag = 'internal scratch']
  %s0 = inlined_call_operand.hbm [shape: f32[8,16], index: 0, kind: input, shape index: {}]
  %s1 = inlined_call_operand.hbm [shape: f32[8,13], index: 1, kind: output, shape index: {}]
  %s2 = sld [smem:[#allocation0]]
  $region18: #{tpu_custom_call.1} parent=0
    _
  %s4 = ssub.s32 1, %s2
  %s5 = scalar_select 0, %s4, %s2
  $region1: #{tpu_custom_call.1} parent=0
    #allocation2 [shape = 'u8[4096]{0}', space=vmem, size = 0x1000, scoped, tag = 'input window, operand 0, single buffered']
    #allocation3 [shape = 's32[1]{0}', space=sflag, size = 0x4, scoped, tag = 'scoped memory for tpu_custom_call.1']
    #allocation4 [shape = 's32[1]{0}', space=sflag, size = 0x4, scoped, tag = 'scoped memory for tpu_custom_call.1']
    #allocation5 [shape = 'u8[4096]{0}', space=vmem, size = 0x1000, scoped, tag = 'output window, operand 0, single buffered']
    %6 = vsyncpa [#allocation3], 0
    %7 = vsyncpa [#allocation4], 0
    // Predicated region
    $region2: #{tpu_custom_call.1} parent=1 // pred_check
      _
    $region3: #{tpu_custom_call.1} parent=1 // pred_check_branch
      %9 = sbr.rel (0) target = $region5
    $region4: #{tpu_custom_call.1} parent=1 // pred_region
      %11 = vsyncadd [#allocation3], 0
      %s13 = sshll.u32 %s0, 4
      %s14 = int_to_ptr.hbm [resolvable:$true] %s13
      %s15 = sshll.u32 [#allocation2], 4
      %s16 = int_to_ptr.vmem [resolvable:$true] %s15
      %18 = dma.hbm_to_vmem [thread:$0]  %s14, 128, %s16, [#allocation3]
    $region5: #{tpu_custom_call.1} parent=1 // pred_fallthru
      _
    // Predicated region
    $region6: #{tpu_custom_call.1} parent=1 // pred_check
      _
    $region7: #{tpu_custom_call.1} parent=1 // pred_check_branch
      %20 = sbr.rel (0) target = $region9
    $region8: #{tpu_custom_call.1} parent=1 // pred_region
      %22 = dma.done [#allocation3], 128
    $region9: #{tpu_custom_call.1} parent=1 // pred_fallthru
      _
    %v23 = vld [vmem:[#allocation2] sm:$0xff]
    %24 = vst [vmem:[#allocation5] sm:$0xff] %v23
    // Predicated region
    $region10: #{tpu_custom_call.1} parent=1 // pred_check
      _
    $region11: #{tpu_custom_call.1} parent=1 // pred_check_branch
      %26 = sbr.rel (0) target = $region13
    $region12: #{tpu_custom_call.1} parent=1 // pred_region
      %28 = vsyncadd [#allocation4], 0
      %s30 = sshll.u32 [#allocation5], 4
      %s31 = int_to_ptr.vmem [resolvable:$true] %s30
      %s32 = sshll.u32 %s1, 4
      %s33 = int_to_ptr.hbm [resolvable:$true] %s32
      %35 = dma.vmem_to_hbm [thread:$0]  %s31, 128, %s33, [#allocation4]
    $region13: #{tpu_custom_call.1} parent=1 // pred_fallthru
      _
    // Predicated region
    $region14: #{tpu_custom_call.1} parent=1 // pred_check
      _
    $region15: #{tpu_custom_call.1} parent=1 // pred_check_branch
      %37 = sbr.rel (0) target = $region17
    $region16: #{tpu_custom_call.1} parent=1 // pred_region
      %39 = dma.done [#allocation4], 128
    $region17: #{tpu_custom_call.1} parent=1 // pred_fallthru
      _
    %40 = vsyncpa [#allocation3], 1
    %41 = vsyncpa [#allocation4], 1

</llo_original>
